<compile_context>
chip_gen: v5e
topology: v5e:2x2
jax: 0.10.0
libtpu: 0.0.40
codegen_flags: <defaults>
</compile_context>

<pallas_src>
import math

import jax
import jax.numpy as jnp
from jax import lax
from jax.experimental import pallas as pl
from jax.experimental.pallas import tpu as pltpu


def _round_up(x, m):
    return (x + m - 1) // m * m


def _vmem_cap_bytes():
    try:
        return int(pltpu.get_tpu_info().vmem_capacity_bytes)
    except Exception:
        return 64 << 20  # conservative default (v7x per-core VMEM)


# --------------------------------------------------------------------------------------
# Small-shape fast path: whole operands in VMEM, single invocation, fused bias + ReLU
# (+ optional fused action gather).  No grid, no padding, no pipeline overhead.
# --------------------------------------------------------------------------------------

def _linear_relu_small_kernel(x_ref, w_ref, b_ref, o_ref):
    q = jnp.dot(x_ref[...], w_ref[...], preferred_element_type=jnp.float32)
    o_ref[...] = jnp.maximum(q + b_ref[...], 0.0)


def _linear_relu_gather_small_kernel(x_ref, w_ref, b_ref, a_ref, o_ref):
    q = jnp.dot(x_ref[...], w_ref[...], preferred_element_type=jnp.float32)
    q = jnp.maximum(q + b_ref[...], 0.0)
    ids = a_ref[...]                                       # (B, 1) int32
    col = lax.broadcasted_iota(jnp.int32, q.shape, 1)      # (B, O)
    # One-hot select + lane reduction (XLU) -> gathered column; Q never hits HBM.
    o_ref[...] = jnp.sum(jnp.where(col == ids, q, 0.0), axis=1, keepdims=True)


def linear_relu_small(x, w, b, action=None):
    """relu(x @ w + b) (optionally gathered at `action`) for sub-tile problems."""
    B = x.shape[0]
    O = w.shape[1]
    vmem = pl.BlockSpec(memory_space=pltpu.MemorySpace.VMEM)
    if action is None:
        return pl.pallas_call(
            _linear_relu_small_kernel,
            out_shape=jax.ShapeDtypeStruct((B, O), jnp.float32),
            in_specs=[vmem, vmem, vmem],
            out_specs=vmem,
        )(x, w, b)
    return pl.pallas_call(
        _linear_relu_gather_small_kernel,
        out_shape=jax.ShapeDtypeStruct((B, 1), jnp.float32),
        in_specs=[vmem, vmem, vmem, vmem],
        out_specs=vmem,
    )(x, w, b, action)


# --------------------------------------------------------------------------------------
# Tiled path: (M, N, K) grid, f32 output tile doubles as the accumulator.
# --------------------------------------------------------------------------------------

def _linear_relu_tiled_kernel(x_ref, w_ref, b_ref, o_ref):
    k = pl.program_id(2)
    part = jnp.dot(x_ref[...], w_ref[...], preferred_element_type=jnp.float32)

    @pl.when(k == 0)
    def _():
        o_ref[...] = part            # first K step: write (no zero-fill + add)

    @pl.when(k > 0)
    def _():
        o_ref[...] += part           # accumulate into the resident f32 output tile

    @pl.when(k == pl.num_programs(2) - 1)
    def _():
        o_ref[...] = jnp.maximum(o_ref[...] + b_ref[...], 0.0)   # fused bias + ReLU


def _lane_tile(dim_p, cap):
    """Largest multiple-of-128 tile <= cap that evenly divides dim_p (dim_p % 128 == 0)."""
    if dim_p <= cap:
        return dim_p
    best, t = 128, 256
    while t <= cap:
        if dim_p % t == 0:
            best = t
        t += 128
    return best


def _choose_tiles(B, Kp, Np, itemsize, budget):
    Mp8 = _round_up(B, 8)

    def footprint(tm, tk, tn):
        # double-buffered x / w / bias tiles + f32 output tile (x2 pipeline slack)
        return 2 * (tm * tk + tk * tn) * itemsize + 2 * tn * 4 + 2 * tm * tn * 4

    tm = 8
    for cand in (512, 256, 128, 64, 32, 16, 8):
        if cand <= Mp8 and (_round_up(Mp8, cand) - Mp8) * 8 <= Mp8:   # <=12.5% pad waste
            tm = cand
            break

    tn = _lane_tile(Np, 512)
    # Prefer un-tiled K: single reduction step (v7x MRB accumulates in place, no
    # accumulator VMEM round trips).
    tk = Kp if footprint(tm, Kp, tn) <= budget else _lane_tile(Kp, 512)

    for cap in (384, 256, 128):
        if footprint(tm, tk, tn) <= budget:
            break
        tk = min(tk, _lane_tile(Kp, cap))
    for cap in (256, 128):
        if footprint(tm, tk, tn) <= budget:
            break
        tn = min(tn, _lane_tile(Np, cap))
    while footprint(tm, tk, tn) > budget and tm > 8:
        tm //= 2

    # v7x megacore: make sure at least one "parallel" axis has >= 2 blocks.
    if _round_up(Mp8, tm) // tm == 1 and Np // tn == 1:
        if Np >= 256:
            tn = _lane_tile(Np, tn // 2)
        elif Mp8 >= 16:
            tm = max(8, tm // 2)

    return tm, tk, tn


def linear_relu_tiled(x, w_p, b_p, n_output, *, tm=None, tk=None, tn=None):
    """relu(x @ w + b) over a tiled (M, N, K) grid.

    x:   (B, F)  compute dtype (bf16 or f32)
    w_p: (Kp, Np) weights pre-padded to multiples of 128 (cached in __init__)
    b_p: (1, Np)  f32 bias, pre-padded
    Returns (B, n_output) f32.
    """
    B, F = x.shape
    Kp, Np = w_p.shape
    itemsize = jnp.dtype(w_p.dtype).itemsize

    vmem_cap = _vmem_cap_bytes()
    budget = min(vmem_cap // 2, 32 << 20)               # generation-aware tile budget
    atm, atk, atn = _choose_tiles(B, Kp, Np, itemsize, budget)
    tm, tk, tn = tm or atm, tk or atk, tn or atn

    Mp = _round_up(B, tm)
    if (Mp, Kp) != (B, F):
        # Zero padding: padded K columns/rows contribute 0 to the dot.
        x = jnp.pad(x, ((0, Mp - B), (0, Kp - F)))

    grid = (Mp // tm, Np // tn, Kp // tk)

    cost = pl.CostEstimate(
        flops=2 * Mp * Kp * Np,
        transcendentals=0,
        bytes_accessed=(Mp * Kp * itemsize * grid[1]       # x re-read per N tile
                        + Kp * Np * itemsize * grid[0]     # w re-read per M tile
                        + Np * 4 * grid[0]
                        + Mp * Np * 4),
    )

    fp = 2 * (tm * tk + tk * tn) * itemsize + 2 * tn * 4 + 2 * tm * tn * 4
    # Headroom for Mosaic scratch; never request the whole of VMEM (v7x has only 64 MiB).
    vmem_limit = int(min(max(fp + (4 << 20), 16 << 20), (vmem_cap * 3) // 4))

    out = pl.pallas_call(
        _linear_relu_tiled_kernel,
        out_shape=jax.ShapeDtypeStruct((Mp, Np), jnp.float32),
        grid_spec=pltpu.PrefetchScalarGridSpec(
            num_scalar_prefetch=0,
            grid=grid,
            in_specs=[
                pl.BlockSpec((tm, tk), lambda i, j, k: (i, k)),
                pl.BlockSpec((tk, tn), lambda i, j, k: (k, j)),
                pl.BlockSpec((1, tn), lambda i, j, k: (0, j)),
            ],
            out_specs=pl.BlockSpec((tm, tn), lambda i, j, k: (i, j)),
        ),
        compiler_params=pltpu.CompilerParams(
            dimension_semantics=("parallel", "parallel", "arbitrary"),
            vmem_limit_bytes=vmem_limit,
        ),
        cost_estimate=cost,
    )(x, w_p, b_p)

    if (Mp, Np) != (B, n_output):
        out = out[:B, :n_output]
    return out


# --------------------------------------------------------------------------------------
# Module port
# --------------------------------------------------------------------------------------

class LinearNetworkJAX:
    """JAX/Pallas port of the PyTorch LinearNetwork (Linear -> ReLU, optional gather)."""

    _SMALL_PATH_BYTES = 4 << 20   # full-operand VMEM footprint for the single-block path

    def __init__(self, input_shape, output_shape, key, compute_dtype=jnp.bfloat16):
        n_input = input_shape[-1]
        n_output = output_shape[0]
        self.n_input, self.n_output = n_input, n_output
        self.compute_dtype = compute_dtype

        k_w, k_b = jax.random.split(key)
        # nn.init.xavier_uniform_(weight, gain=calculate_gain('relu')):
        # bound = gain * sqrt(6 / (fan_in + fan_out)), gain = sqrt(2)
        gain = math.sqrt(2.0)
        bound_w = gain * math.sqrt(6.0 / (n_input + n_output))
        w_torch_layout = jax.random.uniform(
            k_w, (n_output, n_input), jnp.float32, -bound_w, bound_w)
        self.w = jnp.transpose(w_torch_layout)                  # (n_input, n_output), f32
        # nn.Linear default bias init: U(-1/sqrt(fan_in), 1/sqrt(fan_in))
        bound_b = 1.0 / math.sqrt(n_input)
        self.b = jax.random.uniform(k_b, (1, n_output), jnp.float32, -bound_b, bound_b)

        # Compute-dtype weights for the MXU (bf16 by default; pass float32 for parity).
        self.w_c = self.w.astype(compute_dtype)
        # Pre-padded, lane-aligned weights/bias for the tiled path (hoisted out of forward).
        Kp, Np = _round_up(n_input, 128), _round_up(n_output, 128)
        self.w_p = jnp.pad(self.w, ((0, Kp - n_input), (0, Np - n_output))).astype(compute_dtype)
        self.b_p = jnp.pad(self.b, ((0, 0), (0, Np - n_output)))

    def _use_small_path(self, batch):
        itemsize = jnp.dtype(self.compute_dtype).itemsize
        full = ((batch * self.n_input + self.n_input * self.n_output) * itemsize
                + (batch * self.n_output + self.n_output + batch) * 4)
        return batch <= 1024 and full <= self._SMALL_PATH_BYTES

    def __call__(self, state, action=None):
        # torch.squeeze(state, 1).float(), then cast to the MXU compute dtype.
        x = jnp.squeeze(state, axis=1).astype(jnp.float32).astype(self.compute_dtype)
        batch = x.shape[0]

        if self._use_small_path(batch):
            if action is None:
                return linear_relu_small(x, self.w_c, self.b)
            q_acted = linear_relu_small(x, self.w_c, self.b, action.astype(jnp.int32))
            return jnp.squeeze(q_acted)          # matches torch .squeeze()

        q = linear_relu_tiled(x, self.w_p, self.b_p, self.n_output)
        if action is None:
            return q
        # TODO(synk): fuse the gather into the tiled epilogue via scalar-prefetched action ids.
        q_acted = jnp.take_along_axis(q, action.astype(jnp.int32), axis=1)
        return jnp.squeeze(q_acted)


if __name__ == "__main__":
    key = jax.random.PRNGKey(0)
    k_params, k_state, k_action = jax.random.split(key, 3)

    # Shapes implied by the module: state (batch, 1, n_input), action (batch, 1).
    batch, n_input, n_output = 2, 32, 16
    state = jax.random.normal(k_state, (batch, 1, n_input), jnp.float32)
    action = jax.random.randint(k_action, (batch, 1), 0, n_output)
    x = jnp.squeeze(state, axis=1)

    # --- bf16-fed MXU (default), small fast path with fused gather ---------------------
    net = LinearNetworkJAX((n_input,), (n_output,), k_params)
    q = net(state)
    q_acted = net(state, action)
    jax.block_until_ready(q)
    jax.block_until_ready(q_acted)

    # Reference with the same bf16 operand cast (f32 accumulation).
    q_ref = jnp.maximum(
        jnp.dot(x.astype(jnp.bfloat16), net.w_c, preferred_element_type=jnp.float32) + net.b,
        0.0)
    assert q.shape == (batch, n_output)
    assert jnp.allclose(q, q_ref, atol=1e-3, rtol=1e-3), "mismatch vs reference (small)"
    q_acted_ref = jnp.squeeze(jnp.take_along_axis(q_ref, action, axis=1))
    assert q_acted.shape == (batch,)
    assert jnp.allclose(q_acted, q_acted_ref, atol=1e-3, rtol=1e-3), "mismatch (gather)"

    # --- strict f32 parity mode ---------------------------------------------------------
    net32 = LinearNetworkJAX((n_input,), (n_output,), k_params, compute_dtype=jnp.float32)
    q32 = net32(state)
    jax.block_until_ready(q32)
    q32_ref = jnp.maximum(
        jnp.dot(x, net32.w, precision=jax.lax.Precision.HIGHEST) + net32.b, 0.0)
    assert jnp.allclose(q32, q32_ref, atol=1e-4, rtol=1e-4), "mismatch (f32 parity)"

    # --- tiled path: unaligned O, single-K step and multi-K accumulation ---------------
    b2, f2, o2 = 16, 384, 144
    k_p2, k_s2 = jax.random.split(jax.random.PRNGKey(1))
    net2 = LinearNetworkJAX((f2,), (o2,), k_p2)
    state2 = jax.random.normal(k_s2, (b2, 1, f2), jnp.float32)
    x2 = jnp.squeeze(state2, axis=1).astype(jnp.bfloat16)
    q2_ref = jnp.maximum(
        jnp.dot(x2, net2.w_c, preferred_element_type=jnp.float32) + net2.b, 0.0)

    q2a = linear_relu_tiled(x2, net2.w_p, net2.b_p, o2)            # un-tiled K (one step)
    q2b = linear_relu_tiled(x2, net2.w_p, net2.b_p, o2, tk=128)    # 3 K steps (+= path)
    jax.block_until_ready(q2a)
    jax.block_until_ready(q2b)
    assert q2a.shape == (b2, o2) and q2b.shape == (b2, o2)
    assert jnp.allclose(q2a, q2_ref, atol=1e-3, rtol=1e-3), "mismatch (tiled, K=1)"
    assert jnp.allclose(q2b, q2_ref, atol=1e-3, rtol=1e-3), "mismatch (tiled, K split)"

    print("KERNEL_OK")
</pallas_src>

<mosaic_0001>
module attributes {stable_mosaic.version = 11 : i64} {
  func.func @_linear_relu_small_kernel(%arg0: memref<2x32xbf16, #tpu.memory_space<vmem>>, %arg1: memref<32x16xbf16, #tpu.memory_space<vmem>>, %arg2: memref<1x16xf32, #tpu.memory_space<vmem>>, %arg3: memref<2x16xf32, #tpu.memory_space<vmem>>) attributes {dimension_semantics = [], scalar_prefetch = 0 : i64, scratch_operands = 0 : i64, tpu.core_type = #tpu.core_type<tc>} {
    %c0 = arith.constant 0 : index
    %c0_0 = arith.constant 0 : index
    %0 = vector.load %arg0[%c0, %c0_0] : memref<2x32xbf16, #tpu.memory_space<vmem>>, vector<2x32xbf16>
    %c0_1 = arith.constant 0 : index
    %c0_2 = arith.constant 0 : index
    %1 = vector.load %arg1[%c0_1, %c0_2] : memref<32x16xbf16, #tpu.memory_space<vmem>>, vector<32x16xbf16>
    %cst = arith.constant dense<0.000000e+00> : vector<2x16xf32>
    %2 = tpu.matmul %0, %1, %cst {dimension_numbers = #tpu.dot_dimension_numbers<[1], [0], [0], [1], [0, 0, 1, 1], [], []>} : vector<2x32xbf16>, vector<32x16xbf16>, vector<2x16xf32> -> vector<2x16xf32>
    %c0_3 = arith.constant 0 : index
    %c0_4 = arith.constant 0 : index
    %3 = vector.load %arg2[%c0_3, %c0_4] : memref<1x16xf32, #tpu.memory_space<vmem>>, vector<1x16xf32>
    %4 = vector.broadcast %3 : vector<1x16xf32> to vector<2x16xf32>
    %5 = arith.addf %2, %4 : vector<2x16xf32>
    %cst_5 = arith.constant 0.000000e+00 : f32
    %6 = vector.broadcast %cst_5 : f32 to vector<2x16xf32>
    %7 = arith.maximumf %5, %6 : vector<2x16xf32>
    %c0_6 = arith.constant 0 : index
    %c0_7 = arith.constant 0 : index
    %8 = vector.load %arg3[%c0_6, %c0_7] : memref<2x16xf32, #tpu.memory_space<vmem>>, vector<2x16xf32>
    tpu.vector_store %arg3[%c0_6, %c0_7], %7 {strides = array<i32>} : memref<2x16xf32, #tpu.memory_space<vmem>>, vector<2x16xf32>,
    return
  }
}

</mosaic_0001>

<llo_original>
// kernel: tpu_custom_call.1
$region0: #{tpu_custom_call.1}
  #allocation0 [shape = 'u32[]', space=smem, size = 0x4, offset = 0x4, fixed_abs, tag = 'smem constant byte address 0x4 - core index']
  #allocation1 [shape = 'u32[72,128]{1,0:T(1,128)}', space=vmem, size = 0x9000, scoped, tag = 'internal scratch']
  %s0 = inlined_call_operand.vmem [shape: bf16[2,32], index: 0, kind: input, shape index: {}]
  %s1 = inlined_call_operand.vmem [shape: bf16[32,16], index: 1, kind: input, shape index: {}]
  %s2 = inlined_call_operand.vmem [shape: f32[1,16], index: 2, kind: input, shape index: {}]
  %s3 = inlined_call_operand.hbm [shape: f32[2,16], index: 3, kind: output, shape index: {}]
  %s4 = sld [smem:[#allocation0]]
  $region22: #{tpu_custom_call.1} parent=0
    _
  %s6 = ssub.s32 1, %s4
  %s7 = scalar_select 0, %s6, %s4
  $region1: #{tpu_custom_call.1} parent=0
    #allocation2 [shape = 'u8[1024]{0}', space=vmem, size = 0x400, scoped, tag = 'output window, operand 0, single buffered']
    #allocation3 [shape = 's32[1]{0}', space=sflag, size = 0x4, scoped, tag = 'scoped memory for tpu_custom_call.1']
    %8 = vsyncpa [#allocation3], 0
    // Predicated region
    $region2: #{tpu_custom_call.1} parent=1 // pred_check
      _
    $region3: #{tpu_custom_call.1} parent=1 // pred_check_branch
      %10 = sbr.rel (0) target = $region5
    $region4: #{tpu_custom_call.1} parent=1 // pred_region
      _
    $region5: #{tpu_custom_call.1} parent=1 // pred_fallthru
      _
    // Predicated region
    $region6: #{tpu_custom_call.1} parent=1 // pred_check
      _
    $region7: #{tpu_custom_call.1} parent=1 // pred_check_branch
      %12 = sbr.rel (0) target = $region9
    $region8: #{tpu_custom_call.1} parent=1 // pred_region
      _
    $region9: #{tpu_custom_call.1} parent=1 // pred_fallthru
      _
    // Predicated region
    $region10: #{tpu_custom_call.1} parent=1 // pred_check
      _
    $region11: #{tpu_custom_call.1} parent=1 // pred_check_branch
      %14 = sbr.rel (0) target = $region13
    $region12: #{tpu_custom_call.1} parent=1 // pred_region
      _
    $region13: #{tpu_custom_call.1} parent=1 // pred_fallthru
      _
    %v16 = vld [vmem:[%s0] sm:$0x1]
    %v17 = vld [vmem:[%s1] sm:$0xf]
    %v18 = vld [vmem:[%s1 + $0x4] sm:$0xf]
    %v19 = vld [vmem:[%s1 + $0x8] sm:$0xf]
    %v20 = vld [vmem:[%s1 + $0xc] sm:$0xf]
    %v21 = vld [vmem:[%s2] sm:$0x1]
    %v23 = vperm.slane %v21, 0
    %v29 = vunpack.c.l.b16 %v17
    %v30 = vunpack.c.l.b16 %v18
    %v31 = vunpack.c.l.b16 %v19
    %v32 = vunpack.c.l.b16 %v20
    %v33 = vpack.c.b16 %v30, %v29
    %v34 = vpack.c.b16 %v32, %v31
    %vm37 = vcmask 261120
    %v39 = vsel %vm37, %v16, 0
    %41 = vmatpush.bf16.msra.mxu0 0
    %42 = vmatpush.bf16.msra.mxu0 0
    %43 = vmatpush.bf16.msra.mxu0 0
    %44 = vmatpush.bf16.msra.mxu0 0
    %45 = vmatpush.bf16.msra.mxu0 0
    %46 = vmatpush.bf16.msra.mxu0 0
    %47 = vmatpush.bf16.msra.mxu0 %v34
    %48 = vmatpush.bf16.msra.mxu0 %v33
    %49 = vmatmul.bf16.gmra.mxu0 %v39
    %v50 = vpop.f32.mrf.mxu0
    %v51 = vadd.f32 %v23, %v50
    %v52 = vpop.f32.mrf.mxu0
    %53 = vdwg.mxu0
    %v54 = vmax.f32 %v51, 0.0
    %vm55 = vcmask 123904
    %56 = vst.msk [vmem:[#allocation2] sm:$0x3] %vm55, %v54
    // Predicated region
    $region14: #{tpu_custom_call.1} parent=1 // pred_check
      _
    $region15: #{tpu_custom_call.1} parent=1 // pred_check_branch
      %58 = sbr.rel (0) target = $region17
    $region16: #{tpu_custom_call.1} parent=1 // pred_region
      %60 = vsyncadd [#allocation3], 0
      %s62 = sshll.u32 [#allocation2], 4
      %s63 = int_to_ptr.vmem [resolvable:$true] %s62
      %s64 = sshll.u32 %s3, 4
      %s65 = int_to_ptr.hbm [resolvable:$true] %s64
      %67 = dma.vmem_to_hbm [thread:$0]  %s63, 32, %s65, [#allocation3]
    $region17: #{tpu_custom_call.1} parent=1 // pred_fallthru
      _
    // Predicated region
    $region18: #{tpu_custom_call.1} parent=1 // pred_check
      _
    $region19: #{tpu_custom_call.1} parent=1 // pred_check_branch
      %69 = sbr.rel (0) target = $region21
    $region20: #{tpu_custom_call.1} parent=1 // pred_region
      %71 = dma.done [#allocation3], 32
    $region21: #{tpu_custom_call.1} parent=1 // pred_fallthru
      _
    %72 = vsyncpa [#allocation3], 1

</llo_original>
